<compile_context>
chip_gen: v7x
topology: tpu7x:2x2x1
jax: 0.10.0
libtpu: 0.0.40
codegen_flags: <defaults>
</compile_context>

<pallas_src>
import jax
import jax.numpy as jnp
from jax import lax
from jax.experimental import pallas as pl
from jax.experimental.pallas import tpu as pltpu

K_SIZE = 3        # ECA Conv1d kernel size (module default); kernel body hardcodes 3 taps
LN_EPS = 1e-5     # torch.nn.LayerNorm default eps


def _round_up(a, m):
    return (a + m - 1) // m * m


def fused_kernel(wconv_ref, x_ref, gamma_ref, beta_ref, w_ref, bias_ref,
                 o_ref, xn_ref, acc_ref):
    """Grid: (batch tiles, K tiles).  Ref shapes:
         wconv_ref : (3,)          SMEM   ECA conv taps
         x_ref     : (TM, D_IN)    VMEM   input rows (same block for every k)
         gamma_ref : (1, D_IN)     VMEM   LayerNorm weight
         beta_ref  : (1, D_IN)     VMEM   LayerNorm bias
         w_ref     : (TK, D_OUT)   VMEM   k-th K-slice of the (D_IN, D_OUT) Linear weight
         bias_ref  : (1, D_OUT)    VMEM   Linear bias
         o_ref     : (TM, D_OUT)   VMEM   output rows (same block for every k)
         xn_ref    : (NK, TM, TK)  VMEM   scratch: LayerNorm-ed rows, chunked along K
         acc_ref   : (TM, D_OUT)   VMEM   scratch: f32 matmul accumulator
    """
    k = pl.program_id(1)
    nk = pl.num_programs(1)
    tk = xn_ref.shape[2]

    # ---- k == 0: LayerNorm the whole (TM, D_IN) row block once, cache per-K chunks ----
    @pl.when(k == 0)
    def _():
        x = x_ref[...].astype(jnp.float32)                       # (TM, D_IN)
        mu = jnp.mean(x, axis=-1, keepdims=True)
        xc = x - mu
        var = jnp.mean(xc * xc, axis=-1, keepdims=True)
        xn = xc * lax.rsqrt(var + LN_EPS)
        xn = xn * gamma_ref[...].astype(jnp.float32) + beta_ref[...].astype(jnp.float32)
        for j in range(xn_ref.shape[0]):                         # static, unrolled chunk store
            xn_ref[j] = xn[:, j * tk:(j + 1) * tk]
        acc_ref[...] = jnp.zeros_like(acc_ref)

    # ---- every k: accumulate the k-th K-slice of the Linear layer on the MXU ----
    acc_ref[...] += jnp.dot(xn_ref[k], w_ref[...].astype(jnp.float32),
                            preferred_element_type=jnp.float32)

    # ---- last k: bias + fused ECA gate (relu -> 3-tap conv over D_OUT -> sigmoid) ----
    @pl.when(k == nk - 1)
    def _():
        y = acc_ref[...] + bias_ref[...].astype(jnp.float32)     # (TM, C)
        g = jnp.maximum(y, 0.0)                                  # relu (length==1 => mean==id)
        c = g.shape[-1]
        lane = lax.broadcasted_iota(jnp.int32, g.shape, dimension=1)
        # out[c] = w0*g[c-1] + w1*g[c] + w2*g[c+1], zero padded; only border taps masked.
        left = jnp.where(lane >= 1, pltpu.roll(g, shift=1, axis=1), 0.0)
        right = jnp.where(lane < c - 1, pltpu.roll(g, shift=c - 1, axis=1), 0.0)
        conv = wconv_ref[0] * left + wconv_ref[1] * g + wconv_ref[2] * right
        gate = jax.nn.sigmoid(conv)
        o_ref[...] = (y * gate).astype(o_ref.dtype)


def concat_dense_eca_forward(inputs, ln_gamma, ln_beta, fc_weight, fc_bias, eca_weight):
    """ConcatDenseECA forward (eval mode).

    inputs     : sequence of (B, d_i) arrays, concatenated along dim 1 -> (B, D_IN)
    ln_gamma   : (D_IN,) LayerNorm weight      ln_beta : (D_IN,) LayerNorm bias
    fc_weight  : (D_OUT, D_IN) Linear weight (torch layout)
    fc_bias    : (D_OUT,) Linear bias
    eca_weight : (K_SIZE,) ECA Conv1d(1, 1, 3, bias=False) taps
    returns    : (B, D_OUT)
    """
    # TODO(synk): fusion_dropout is identity in eval mode; training-mode dropout
    # (pltpu.prng_* masking) is not implemented.
    x = jnp.concatenate([jnp.asarray(t) for t in inputs], axis=1)
    B, d_in = x.shape
    d_out = fc_weight.shape[0]
    assert fc_weight.shape == (d_out, d_in)
    assert eca_weight.shape == (K_SIZE,)
    assert d_out >= K_SIZE
    out_dtype = x.dtype

    # Batch tiling: many rows per grid step; keep >= 2 batch tiles when B allows so the
    # "parallel" axis can shard across v7x's two TensorCores.
    if B > 8:
        tm = min(128, _round_up(pl.cdiv(B, 2), 8))
    else:
        tm = _round_up(max(B, 1), 8)
    b_pad = _round_up(B, tm)
    if b_pad != B:
        x = jnp.pad(x, ((0, b_pad - B), (0, 0)))

    # K tiling: stream the (D_IN, D_OUT) weight through VMEM in lane-dense (TK, D_OUT) slices.
    for cand in (512, 256, 128):
        if d_in % cand == 0:
            tk = cand
            break
    else:
        tk = d_in
    nk = d_in // tk
    nb = b_pad // tm

    w_t = fc_weight.T                     # (D_IN, D_OUT): K on sublanes, lane-dense N
    gamma2 = ln_gamma.reshape(1, d_in)
    beta2 = ln_beta.reshape(1, d_in)
    bias2 = fc_bias.reshape(1, d_out)

    out = pl.pallas_call(
        fused_kernel,
        out_shape=jax.ShapeDtypeStruct((b_pad, d_out), out_dtype),
        grid=(nb, nk),
        in_specs=[
            pl.BlockSpec(memory_space=pltpu.SMEM),                  # conv taps (scalar reads)
            pl.BlockSpec((tm, d_in), lambda i, k: (i, 0)),          # x rows (revisited over k)
            pl.BlockSpec((1, d_in), lambda i, k: (0, 0)),           # LN gamma
            pl.BlockSpec((1, d_in), lambda i, k: (0, 0)),           # LN beta
            pl.BlockSpec((tk, d_out), lambda i, k: (k, 0)),         # Linear weight K-slice
            pl.BlockSpec((1, d_out), lambda i, k: (0, 0)),          # Linear bias
        ],
        out_specs=pl.BlockSpec((tm, d_out), lambda i, k: (i, 0)),   # lane-dense output rows
        scratch_shapes=[
            pltpu.VMEM((nk, tm, tk), jnp.float32),                  # cached LayerNorm rows
            pltpu.VMEM((tm, d_out), jnp.float32),                   # f32 matmul accumulator
        ],
        compiler_params=pltpu.CompilerParams(
            dimension_semantics=("parallel", "arbitrary"),
            vmem_limit_bytes=48 * 1024 * 1024,                      # > v5e's 16 MiB default,
        ),                                                          # < v7x's 64 MiB physical
    )(eca_weight, x, gamma2, beta2, w_t, bias2)

    return out[:B]


def reference_forward(inputs, ln_gamma, ln_beta, fc_weight, fc_bias, eca_weight):
    """Pure-JAX reference matching the PyTorch module in eval mode."""
    x = jnp.concatenate(list(inputs), axis=1).astype(jnp.float32)
    mu = jnp.mean(x, axis=-1, keepdims=True)
    var = jnp.mean(jnp.square(x - mu), axis=-1, keepdims=True)
    xn = (x - mu) * lax.rsqrt(var + LN_EPS) * ln_gamma + ln_beta
    y = jnp.dot(xn, fc_weight.T, precision=lax.Precision.HIGHEST) + fc_bias
    g = jnp.maximum(y, 0.0)
    c = y.shape[-1]
    gp = jnp.pad(g, ((0, 0), (1, 1)))
    conv = (eca_weight[0] * gp[:, 0:c] + eca_weight[1] * gp[:, 1:c + 1]
            + eca_weight[2] * gp[:, 2:c + 2])
    return y * jax.nn.sigmoid(conv)


if __name__ == "__main__":
    key = jax.random.PRNGKey(0)
    k1, k2, k3, k4, k5, k6, k7 = jax.random.split(key, 7)

    # Small-shape stand-in for the real module (two 3072-wide embeddings -> 6144 -> 3072):
    # two 512-wide embeddings -> LayerNorm(1024) -> Linear(1024, 256) -> ECA gate.
    B, D_HALF, D_OUT = 4, 512, 256
    D_IN = 2 * D_HALF

    in_a = jax.random.normal(k1, (B, D_HALF), dtype=jnp.float32)
    in_b = jax.random.normal(k2, (B, D_HALF), dtype=jnp.float32)

    ln_gamma = 1.0 + 0.1 * jax.random.normal(k3, (D_IN,), dtype=jnp.float32)
    ln_beta = 0.1 * jax.random.normal(k4, (D_IN,), dtype=jnp.float32)

    fc_bound = 1.0 / float(D_IN) ** 0.5
    fc_weight = jax.random.uniform(k5, (D_OUT, D_IN), minval=-fc_bound, maxval=fc_bound,
                                   dtype=jnp.float32)
    fc_bias = jax.random.uniform(k6, (D_OUT,), minval=-fc_bound, maxval=fc_bound,
                                 dtype=jnp.float32)

    eca_bound = 1.0 / float(K_SIZE) ** 0.5
    eca_weight = jax.random.uniform(k7, (K_SIZE,), minval=-eca_bound, maxval=eca_bound,
                                    dtype=jnp.float32)

    out = concat_dense_eca_forward([in_a, in_b], ln_gamma, ln_beta,
                                   fc_weight, fc_bias, eca_weight)
    out = jax.block_until_ready(out)

    ref = reference_forward([in_a, in_b], ln_gamma, ln_beta, fc_weight, fc_bias, eca_weight)
    assert out.shape == (B, D_OUT)
    # Tolerance accounts for the different f32 accumulation order (tiled MXU vs one XLA dot).
    assert jnp.allclose(out, ref, atol=2e-3, rtol=2e-3), "mismatch vs reference"

    print("KERNEL_OK")
</pallas_src>

<mosaic_0001>
module attributes {stable_mosaic.version = 11 : i64} {
  func.func @fused_kernel(%arg0: i32, %arg1: i32, %arg2: memref<3xf32, #tpu.memory_space<smem>>, %arg3: memref<8x1024xf32, #tpu.memory_space<vmem>>, %arg4: memref<1x1024xf32, #tpu.memory_space<vmem>>, %arg5: memref<1x1024xf32, #tpu.memory_space<vmem>>, %arg6: memref<512x256xf32, #tpu.memory_space<vmem>>, %arg7: memref<1x256xf32, #tpu.memory_space<vmem>>, %arg8: memref<8x256xf32, #tpu.memory_space<vmem>>, %arg9: memref<2x8x512xf32, #tpu.memory_space<vmem>>, %arg10: memref<8x256xf32, #tpu.memory_space<vmem>>) attributes {dimension_semantics = [#tpu.dimension_semantics<parallel>, #tpu.dimension_semantics<arbitrary>], iteration_bounds = array<i64: 1, 2>, scalar_prefetch = 0 : i64, scratch_operands = 2 : i64, tpu.core_type = #tpu.core_type<tc>, window_params = [{transform_indices = @transform_0, window_bounds = array<i64: 3>}, {transform_indices = @transform_1, window_bounds = array<i64: 8, 1024>}, {pipeline_mode = #tpu.pipeline_mode<synchronous>, transform_indices = @transform_2, window_bounds = array<i64: 1, 1024>}, {pipeline_mode = #tpu.pipeline_mode<synchronous>, transform_indices = @transform_3, window_bounds = array<i64: 1, 1024>}, {transform_indices = @transform_4, window_bounds = array<i64: 512, 256>}, {pipeline_mode = #tpu.pipeline_mode<synchronous>, transform_indices = @transform_5, window_bounds = array<i64: 1, 256>}, {transform_indices = @transform_6, window_bounds = array<i64: 8, 256>}]} {
    %c0_i32 = arith.constant 0 : i32
    %0 = arith.cmpi eq, %arg1, %c0_i32 : i32
    %1 = arith.extui %0 : i1 to i32
    %c0_i32_0 = arith.constant 0 : i32
    %2 = arith.cmpi ne, %1, %c0_i32_0 : i32
    scf.if %2 {
      %c0_9 = arith.constant 0 : index
      %c0_10 = arith.constant 0 : index
      %14 = vector.load %arg3[%c0_9, %c0_10] : memref<8x1024xf32, #tpu.memory_space<vmem>>, vector<8x1024xf32>
      %cst_11 = arith.constant dense<0.000000e+00> : vector<8xf32>
      %15 = vector.multi_reduction <add>, %14, %cst_11 [1] : vector<8x1024xf32> to vector<8xf32>
      %16 = vector.shape_cast %15 : vector<8xf32> to vector<8x1xf32>
      %cst_12 = arith.constant 1.024000e+03 : f32
      %17 = vector.broadcast %cst_12 : f32 to vector<8x1xf32>
      %18 = arith.divf %16, %17 : vector<8x1xf32>
      %19 = vector.broadcast %18 : vector<8x1xf32> to vector<8x1024xf32>
      %20 = arith.subf %14, %19 : vector<8x1024xf32>
      %21 = arith.mulf %20, %20 : vector<8x1024xf32>
      %cst_13 = arith.constant dense<0.000000e+00> : vector<8xf32>
      %22 = vector.multi_reduction <add>, %21, %cst_13 [1] : vector<8x1024xf32> to vector<8xf32>
      %23 = vector.shape_cast %22 : vector<8xf32> to vector<8x1xf32>
      %cst_14 = arith.constant 1.024000e+03 : f32
      %24 = vector.broadcast %cst_14 : f32 to vector<8x1xf32>
      %25 = arith.divf %23, %24 : vector<8x1xf32>
      %cst_15 = arith.constant 9.99999974E-6 : f32
      %26 = vector.broadcast %cst_15 : f32 to vector<8x1xf32>
      %27 = arith.addf %25, %26 : vector<8x1xf32>
      %28 = math.rsqrt %27 : vector<8x1xf32>
      %29 = vector.broadcast %28 : vector<8x1xf32> to vector<8x1024xf32>
      %30 = arith.mulf %20, %29 : vector<8x1024xf32>
      %c0_16 = arith.constant 0 : index
      %c0_17 = arith.constant 0 : index
      %31 = vector.load %arg4[%c0_16, %c0_17] : memref<1x1024xf32, #tpu.memory_space<vmem>>, vector<1x1024xf32>
      %32 = vector.broadcast %31 : vector<1x1024xf32> to vector<8x1024xf32>
      %33 = arith.mulf %30, %32 : vector<8x1024xf32>
      %c0_18 = arith.constant 0 : index
      %c0_19 = arith.constant 0 : index
      %34 = vector.load %arg5[%c0_18, %c0_19] : memref<1x1024xf32, #tpu.memory_space<vmem>>, vector<1x1024xf32>
      %35 = vector.broadcast %34 : vector<1x1024xf32> to vector<8x1024xf32>
      %36 = arith.addf %33, %35 : vector<8x1024xf32>
      %37 = vector.extract_strided_slice %36 {offsets = [0, 0], sizes = [8, 512], strides = [1, 1]} : vector<8x1024xf32> to vector<8x512xf32>
      %c0_20 = arith.constant 0 : index
      %c0_21 = arith.constant 0 : index
      %c0_22 = arith.constant 0 : index
      %38 = vector.load %arg9[%c0_20, %c0_21, %c0_22] : memref<2x8x512xf32, #tpu.memory_space<vmem>>, vector<1x8x512xf32>
      %39 = vector.shape_cast %38 : vector<1x8x512xf32> to vector<8x512xf32>
      %40 = vector.shape_cast %37 : vector<8x512xf32> to vector<1x8x512xf32>
      tpu.vector_store %arg9[%c0_20, %c0_21, %c0_22], %40 {strides = array<i32>} : memref<2x8x512xf32, #tpu.memory_space<vmem>>, vector<1x8x512xf32>,
      %41 = vector.extract_strided_slice %36 {offsets = [0, 512], sizes = [8, 512], strides = [1, 1]} : vector<8x1024xf32> to vector<8x512xf32>
      %c1 = arith.constant 1 : index
      %c0_23 = arith.constant 0 : index
      %c0_24 = arith.constant 0 : index
      %42 = vector.load %arg9[%c1, %c0_23, %c0_24] : memref<2x8x512xf32, #tpu.memory_space<vmem>>, vector<1x8x512xf32>
      %43 = vector.shape_cast %42 : vector<1x8x512xf32> to vector<8x512xf32>
      %44 = vector.shape_cast %41 : vector<8x512xf32> to vector<1x8x512xf32>
      tpu.vector_store %arg9[%c1, %c0_23, %c0_24], %44 {strides = array<i32>} : memref<2x8x512xf32, #tpu.memory_space<vmem>>, vector<1x8x512xf32>,
      %cst_25 = arith.constant 0.000000e+00 : f32
      %45 = vector.broadcast %cst_25 : f32 to vector<8x256xf32>
      %c0_26 = arith.constant 0 : index
      %c0_27 = arith.constant 0 : index
      %46 = vector.load %arg10[%c0_26, %c0_27] : memref<8x256xf32, #tpu.memory_space<vmem>>, vector<8x256xf32>
      tpu.vector_store %arg10[%c0_26, %c0_27], %45 {strides = array<i32>} : memref<8x256xf32, #tpu.memory_space<vmem>>, vector<8x256xf32>,
    } else {
    }
    %c0 = arith.constant 0 : index
    %c0_1 = arith.constant 0 : index
    %3 = vector.load %arg10[%c0, %c0_1] : memref<8x256xf32, #tpu.memory_space<vmem>>, vector<8x256xf32>
    %4 = arith.index_cast %arg1 : i32 to index
    %c0_2 = arith.constant 0 : index
    %c0_3 = arith.constant 0 : index
    %5 = vector.load %arg9[%4, %c0_2, %c0_3] : memref<2x8x512xf32, #tpu.memory_space<vmem>>, vector<1x8x512xf32>
    %6 = vector.shape_cast %5 : vector<1x8x512xf32> to vector<8x512xf32>
    %c0_4 = arith.constant 0 : index
    %c0_5 = arith.constant 0 : index
    %7 = vector.load %arg6[%c0_4, %c0_5] : memref<512x256xf32, #tpu.memory_space<vmem>>, vector<512x256xf32>
    %cst = arith.constant dense<0.000000e+00> : vector<8x256xf32>
    %8 = tpu.matmul %6, %7, %cst {dimension_numbers = #tpu.dot_dimension_numbers<[1], [0], [0], [1], [0, 0, 1, 1], [], []>} : vector<8x512xf32>, vector<512x256xf32>, vector<8x256xf32> -> vector<8x256xf32>
    %9 = arith.addf %3, %8 : vector<8x256xf32>
    %c0_6 = arith.constant 0 : index
    %c0_7 = arith.constant 0 : index
    %10 = vector.load %arg10[%c0_6, %c0_7] : memref<8x256xf32, #tpu.memory_space<vmem>>, vector<8x256xf32>
    tpu.vector_store %arg10[%c0_6, %c0_7], %9 {strides = array<i32>} : memref<8x256xf32, #tpu.memory_space<vmem>>, vector<8x256xf32>,
    %c1_i32 = arith.constant 1 : i32
    %11 = arith.cmpi eq, %arg1, %c1_i32 : i32
    %12 = arith.extui %11 : i1 to i32
    %c0_i32_8 = arith.constant 0 : i32
    %13 = arith.cmpi ne, %12, %c0_i32_8 : i32
    scf.if %13 {
      %c0_9 = arith.constant 0 : index
      %c0_10 = arith.constant 0 : index
      %14 = vector.load %arg10[%c0_9, %c0_10] : memref<8x256xf32, #tpu.memory_space<vmem>>, vector<8x256xf32>
      %c0_11 = arith.constant 0 : index
      %c0_12 = arith.constant 0 : index
      %15 = vector.load %arg7[%c0_11, %c0_12] : memref<1x256xf32, #tpu.memory_space<vmem>>, vector<1x256xf32>
      %16 = vector.broadcast %15 : vector<1x256xf32> to vector<8x256xf32>
      %17 = arith.addf %14, %16 : vector<8x256xf32>
      %cst_13 = arith.constant 0.000000e+00 : f32
      %18 = vector.broadcast %cst_13 : f32 to vector<8x256xf32>
      %19 = arith.maximumf %17, %18 : vector<8x256xf32>
      %20 = tpu.iota {dimensions = array<i32: 1>} : vector<8x256xi32>
      %c1_i32_14 = arith.constant 1 : i32
      %21 = vector.broadcast %c1_i32_14 : i32 to vector<8x256xi32>
      %22 = arith.cmpi sge, %20, %21 : vector<8x256xi32>
      %c1_i32_15 = arith.constant 1 : i32
      %23 = tpu.dynamic_rotate %19 by %c1_i32_15 dim 1 : vector<8x256xf32>, i32 -> vector<8x256xf32>
      %cst_16 = arith.constant 0.000000e+00 : f32
      %24 = vector.broadcast %cst_16 : f32 to vector<8x256xf32>
      %25 = arith.select %22, %23, %24 : vector<8x256xi1>, vector<8x256xf32>
      %c255_i32 = arith.constant 255 : i32
      %26 = vector.broadcast %c255_i32 : i32 to vector<8x256xi32>
      %27 = arith.cmpi slt, %20, %26 : vector<8x256xi32>
      %c255_i32_17 = arith.constant 255 : i32
      %28 = tpu.dynamic_rotate %19 by %c255_i32_17 dim 1 : vector<8x256xf32>, i32 -> vector<8x256xf32>
      %cst_18 = arith.constant 0.000000e+00 : f32
      %29 = vector.broadcast %cst_18 : f32 to vector<8x256xf32>
      %30 = arith.select %27, %28, %29 : vector<8x256xi1>, vector<8x256xf32>
      %c0_19 = arith.constant 0 : index
      %31 = memref.load %arg2[%c0_19] : memref<3xf32, #tpu.memory_space<smem>>
      %32 = vector.broadcast %31 : f32 to vector<8x256xf32>
      %33 = arith.mulf %32, %25 : vector<8x256xf32>
      %c1 = arith.constant 1 : index
      %34 = memref.load %arg2[%c1] : memref<3xf32, #tpu.memory_space<smem>>
      %35 = vector.broadcast %34 : f32 to vector<8x256xf32>
      %36 = arith.mulf %35, %19 : vector<8x256xf32>
      %37 = arith.addf %33, %36 : vector<8x256xf32>
      %c2 = arith.constant 2 : index
      %38 = memref.load %arg2[%c2] : memref<3xf32, #tpu.memory_space<smem>>
      %39 = vector.broadcast %38 : f32 to vector<8x256xf32>
      %40 = arith.mulf %39, %30 : vector<8x256xf32>
      %41 = arith.addf %37, %40 : vector<8x256xf32>
      %42 = arith.negf %41 : vector<8x256xf32>
      %43 = math.exp %42 : vector<8x256xf32>
      %cst_20 = arith.constant 1.000000e+00 : f32
      %44 = vector.broadcast %cst_20 : f32 to vector<8x256xf32>
      %45 = arith.addf %44, %43 : vector<8x256xf32>
      %46 = arith.divf %44, %45 : vector<8x256xf32>
      %47 = arith.mulf %17, %46 : vector<8x256xf32>
      %c0_21 = arith.constant 0 : index
      %c0_22 = arith.constant 0 : index
      %48 = vector.load %arg8[%c0_21, %c0_22] : memref<8x256xf32, #tpu.memory_space<vmem>>, vector<8x256xf32>
      tpu.vector_store %arg8[%c0_21, %c0_22], %47 {strides = array<i32>} : memref<8x256xf32, #tpu.memory_space<vmem>>, vector<8x256xf32>,
    } else {
    }
    return
  }
  func.func @transform_0(%arg0: i32, %arg1: i32) -> i32 {
    %c0_i32 = arith.constant 0 : i32
    %c0_i32_0 = arith.constant 0 : i32
    return %c0_i32 : i32
  }
  func.func @transform_1(%arg0: i32, %arg1: i32) -> (i32, i32) {
    %c0_i32 = arith.constant 0 : i32
    %c0_i32_0 = arith.constant 0 : i32
    return %arg0, %c0_i32 : i32, i32
  }
  func.func @transform_2(%arg0: i32, %arg1: i32) -> (i32, i32) {
    %c0_i32 = arith.constant 0 : i32
    %c0_i32_0 = arith.constant 0 : i32
    %c0_i32_1 = arith.constant 0 : i32
    return %c0_i32, %c0_i32_0 : i32, i32
  }
  func.func @transform_3(%arg0: i32, %arg1: i32) -> (i32, i32) {
    %c0_i32 = arith.constant 0 : i32
    %c0_i32_0 = arith.constant 0 : i32
    %c0_i32_1 = arith.constant 0 : i32
    return %c0_i32, %c0_i32_0 : i32, i32
  }
  func.func @transform_4(%arg0: i32, %arg1: i32) -> (i32, i32) {
    %c0_i32 = arith.constant 0 : i32
    %c0_i32_0 = arith.constant 0 : i32
    return %arg1, %c0_i32 : i32, i32
  }
  func.func @transform_5(%arg0: i32, %arg1: i32) -> (i32, i32) {
    %c0_i32 = arith.constant 0 : i32
    %c0_i32_0 = arith.constant 0 : i32
    %c0_i32_1 = arith.constant 0 : i32
    return %c0_i32, %c0_i32_0 : i32, i32
  }
  func.func @transform_6(%arg0: i32, %arg1: i32) -> (i32, i32) {
    %c0_i32 = arith.constant 0 : i32
    %c0_i32_0 = arith.constant 0 : i32
    return %arg0, %c0_i32 : i32, i32
  }
}

</mosaic_0001>

<llo_original>
// kernel: tpu_custom_call.1
$region0: #{tpu_custom_call.1}
  #allocation0 [shape = 'u32[]', space=smem, size = 0x4, offset = 0x4, fixed_abs, tag = 'smem constant byte address 0x4 - core index']
  #allocation1 [shape = 'u32[144,128]{1,0:T(1,128)}', space=vmem, size = 0x12000, scoped, tag = 'internal scratch']
  #allocation2 [shape = 'f32[2,8,512]{2,1,0:T(8,128)}', space=vmem, size = 0x8000, scoped, tag = 'scratch operand']
  #allocation3 [shape = 'f32[8,256]{1,0:T(8,128)}', space=vmem, size = 0x2000, scoped, tag = 'scratch operand']
  %s0 = inlined_call_operand.hbm [shape: f32[3], index: 0, kind: input, shape index: {}]
  %s1 = inlined_call_operand.hbm [shape: f32[8,1024], index: 1, kind: input, shape index: {}]
  %s2 = inlined_call_operand.hbm [shape: f32[1,1024], index: 2, kind: input, shape index: {}]
  %s3 = inlined_call_operand.vmem [shape: f32[1,1024], index: 3, kind: input, shape index: {}]
  %s4 = inlined_call_operand.hbm [shape: f32[1024,256], index: 4, kind: input, shape index: {}]
  %s5 = inlined_call_operand.vmem [shape: f32[1,256], index: 5, kind: input, shape index: {}]
  %s6 = inlined_call_operand.hbm [shape: f32[8,256], index: 6, kind: output, shape index: {}]
  %s7 = sld [smem:[#allocation0]]
  $region81: #{tpu_custom_call.1} parent=0
    _
  %s9 = ssub.s32 1, %s7
  %s10 = scalar_select 0, %s9, %s7
  $region1: #{tpu_custom_call.1} parent=0
    #allocation4 [shape = 'u8[512]{0}', space=smem, size = 0x200, scoped, tag = 'input window, operand 0, single buffered']
    #allocation5 [shape = 's32[2]{0}', space=sflag, size = 0x8, scoped, tag = 'scoped memory for tpu_custom_call.1']
    #allocation6 [shape = 's32[2]{0}', space=sflag, size = 0x8, scoped, tag = 'scoped memory for tpu_custom_call.1']
    #allocation7 [shape = 's32[2]{0}', space=sflag, size = 0x8, scoped, tag = 'scoped memory for tpu_custom_call.1']
    #allocation8 [shape = 'u8[32768]{0}', space=vmem, size = 0x8000, scoped, tag = 'input window, operand 1, single buffered']
    #allocation9 [shape = 'u8[4096]{0}', space=vmem, size = 0x1000, scoped, tag = 'input window, operand 2, single buffered']
    #allocation10 [shape = 's32[1]{0}', space=sflag, size = 0x4, scoped, tag = 'scoped memory for tpu_custom_call.1']
    #allocation11 [shape = 'u8[1048576]{0}', space=vmem, size = 0x100000, scoped, tag = 'input window, operand 4']
    #allocation12 [shape = 'u8[8192]{0}', space=vmem, size = 0x2000, scoped, tag = 'output window, operand 0, single buffered']
    %11 = vsyncpa [#allocation7], 0
    %12 = vsyncpa [#allocation5], 0
    %13 = vsyncpa [#allocation10], 0
    %14 = vsyncpa [#allocation6], 0
    loop: start=0, step=1, limit=4
    $region2: #{tpu_custom_call.1} parent=1 // loop_pre_header
      _
    $region3: #{tpu_custom_call.1} parent=1 // loop_header
      %s16 = sphi 0, %s20
      %p17 = scmp.ge.s32.totalorder %s16, 4
      %s23 = sphi 0, %s35
      %s24 = sphi 0, %s31
      %s25 = sphi 0, %s23
      %s26 = sphi 0, %s24
      %s27 = sphi 0, %s25
      %s28 = sphi 0, %s26
      %s36 = sphi 0, %s36
      %s38 = sphi 0, %s36
      %s39 = sphi 0, %s38
      %s53 = sphi 0, %s39
      %s59 = sphi 0, %s61
      %s62 = sphi 0, %s59
      %s63 = sphi 0, %s62
      %s79 = sphi 0, %s63
      %s83 = sphi 0, %s83
      %s85 = sphi 0, %s83
      %s86 = sphi 0, %s85
      %s100 = sphi 0, %s86
      %s104 = sphi 0, %s104
      %s106 = sphi 0, %s104
      %s107 = sphi 0, %s106
      %s121 = sphi 0, %s107
      %s127 = sphi 0, %s129
      %s130 = sphi 0, %s127
      %s131 = sphi 0, %s130
      %s147 = sphi 0, %s131
      %s151 = sphi 0, %s151
      %s153 = sphi 0, %s151
      %s154 = sphi 0, %s153
      %s168 = sphi 0, %s154
      %s174 = sphi 0, %s176
      %s177 = sphi 0, %s174
      %s178 = sphi 0, %s177
      %s194 = sphi 0, %s178
    $region4: #{tpu_custom_call.1} parent=1 // loop_header_branch
      %19 = sbr.rel (%p17) target = $region8
    $region5: #{tpu_custom_call.1} parent=1 // loop_body
      %s21 = ssub.s32 %s16, 1
      %s22 = ssub.s32 %s16, 2
      %s29 = sadd.s32 1, %s24
      %p30 = scmp.ge.s32.totalorder %s29, 2
      %s31 = scalar_select %p30, 0, %s29
      %s32 = sadd.s32 1, %s23
      %s33 = scalar_select %p30, %s32, %s23
      %p34 = scmp.ge.s32.totalorder %s33, 1
      %s35 = scalar_select %p34, 0, %s33
      %s37 = sadd.s32 %s36, 1
      %p40 = scmp.eq.s32.totalorder %s16, 1
      %p41 = scmp.ne.s32.totalorder %s36, %s38
      %p42 = scmp.eq.s32.totalorder %s16, 0
      %p43 = por %p41, %p42
      %p44 = scmp.ne.s32.totalorder %s36, %s38
      %p45 = scmp.eq.s32.totalorder %s21, 1
      %p46 = por %p44, %p45
      %p47 = scmp.ne.s32.totalorder %s38, %s39
      %p48 = scmp.eq.s32.totalorder %s21, 0
      %p49 = por %p47, %p48
      %p50 = scmp.ne.s32.totalorder %s38, %s39
      %p51 = scmp.eq.s32.totalorder %s22, 1
      %p52 = por %p50, %p51
      %p54 = scmp.ne.s32.totalorder %s39, %s53
      %p55 = scmp.eq.s32.totalorder %s22, 0
      %p56 = por %p54, %p55
      %s57 = ssub.s32 %s23, %s35
      %p58 = scmp.eq.s32.totalorder %s57, 0
      %s60 = sadd.s32 %s59, 1
      %s61 = scalar_select %p58, %s59, %s60
      %p64 = pneg %p58
      %p65 = scmp.eq.s32.totalorder %s16, 1
      %p66 = por %p64, %p65
      %p67 = scmp.ne.s32.totalorder %s59, %s62
      %p68 = scmp.eq.s32.totalorder %s16, 0
      %p69 = por %p67, %p68
      %p70 = scmp.ne.s32.totalorder %s59, %s62
      %p71 = scmp.eq.s32.totalorder %s21, 1
      %p72 = por %p70, %p71
      %p73 = scmp.ne.s32.totalorder %s62, %s63
      %p74 = scmp.eq.s32.totalorder %s21, 0
      %p75 = por %p73, %p74
      %p76 = scmp.ne.s32.totalorder %s62, %s63
      %p77 = scmp.eq.s32.totalorder %s22, 1
      %p78 = por %p76, %p77
      %p80 = scmp.ne.s32.totalorder %s63, %s79
      %p81 = scmp.eq.s32.totalorder %s22, 0
      %p82 = por %p80, %p81
      %s84 = sadd.s32 %s83, 1
      %p87 = scmp.eq.s32.totalorder %s16, 1
      %p88 = scmp.ne.s32.totalorder %s83, %s85
      %p89 = scmp.eq.s32.totalorder %s16, 0
      %p90 = por %p88, %p89
      %p91 = scmp.ne.s32.totalorder %s83, %s85
      %p92 = scmp.eq.s32.totalorder %s21, 1
      %p93 = por %p91, %p92
      %p94 = scmp.ne.s32.totalorder %s85, %s86
      %p95 = scmp.eq.s32.totalorder %s21, 0
      %p96 = por %p94, %p95
      %p97 = scmp.ne.s32.totalorder %s85, %s86
      %p98 = scmp.eq.s32.totalorder %s22, 1
      %p99 = por %p97, %p98
      %p101 = scmp.ne.s32.totalorder %s86, %s100
      %p102 = scmp.eq.s32.totalorder %s22, 0
      %p103 = por %p101, %p102
      %s105 = sadd.s32 %s104, 1
      %p108 = scmp.eq.s32.totalorder %s16, 1
      %p109 = scmp.ne.s32.totalorder %s104, %s106
      %p110 = scmp.eq.s32.totalorder %s16, 0
      %p111 = por %p109, %p110
      %p112 = scmp.ne.s32.totalorder %s104, %s106
      %p113 = scmp.eq.s32.totalorder %s21, 1
      %p114 = por %p112, %p113
      %p115 = scmp.ne.s32.totalorder %s106, %s107
      %p116 = scmp.eq.s32.totalorder %s21, 0
      %p117 = por %p115, %p116
      %p118 = scmp.ne.s32.totalorder %s106, %s107
      %p119 = scmp.eq.s32.totalorder %s22, 1
      %p120 = por %p118, %p119
      %p122 = scmp.ne.s32.totalorder %s107, %s121
      %p123 = scmp.eq.s32.totalorder %s22, 0
      %p124 = por %p122, %p123
      %s125 = ssub.s32 %s24, %s31
      %p126 = scmp.eq.s32.totalorder %s125, 0
      %s128 = sadd.s32 %s127, 1
      %s129 = scalar_select %p126, %s127, %s128
      %p132 = pneg %p126
      %p133 = scmp.eq.s32.totalorder %s16, 1
      %p134 = por %p132, %p133
      %p135 = scmp.ne.s32.totalorder %s127, %s130
      %p136 = scmp.eq.s32.totalorder %s16, 0
      %p137 = por %p135, %p136
      %p138 = scmp.ne.s32.totalorder %s127, %s130
      %p139 = scmp.eq.s32.totalorder %s21, 1
      %p140 = por %p138, %p139
      %p141 = scmp.ne.s32.totalorder %s130, %s131
      %p142 = scmp.eq.s32.totalorder %s21, 0
      %p143 = por %p141, %p142
      %p144 = scmp.ne.s32.totalorder %s130, %s131
      %p145 = scmp.eq.s32.totalorder %s22, 1
      %p146 = por %p144, %p145
      %p148 = scmp.ne.s32.totalorder %s131, %s147
      %p149 = scmp.eq.s32.totalorder %s22, 0
      %p150 = por %p148, %p149
      %s152 = sadd.s32 %s151, 1
      %p155 = scmp.eq.s32.totalorder %s16, 1
      %p156 = scmp.ne.s32.totalorder %s151, %s153
      %p157 = scmp.eq.s32.totalorder %s16, 0
      %p158 = por %p156, %p157
      %p159 = scmp.ne.s32.totalorder %s151, %s153
      %p160 = scmp.eq.s32.totalorder %s21, 1
      %p161 = por %p159, %p160
      %p162 = scmp.ne.s32.totalorder %s153, %s154
      %p163 = scmp.eq.s32.totalorder %s21, 0
      %p164 = por %p162, %p163
      %p165 = scmp.ne.s32.totalorder %s153, %s154
      %p166 = scmp.eq.s32.totalorder %s22, 1
      %p167 = por %p165, %p166
      %p169 = scmp.ne.s32.totalorder %s154, %s168
      %p170 = scmp.eq.s32.totalorder %s22, 0
      %p171 = por %p169, %p170
      %s172 = ssub.s32 %s23, %s35
      %p173 = scmp.eq.s32.totalorder %s172, 0
      %s175 = sadd.s32 %s174, 1
      %s176 = scalar_select %p173, %s174, %s175
      %p179 = pneg %p173
      %p180 = scmp.eq.s32.totalorder %s16, 1
      %p181 = por %p179, %p180
      %p182 = scmp.ne.s32.totalorder %s174, %s177
      %p183 = scmp.eq.s32.totalorder %s16, 0
      %p184 = por %p182, %p183
      %p185 = scmp.ne.s32.totalorder %s174, %s177
      %p186 = scmp.eq.s32.totalorder %s21, 1
      %p187 = por %p185, %p186
      %p188 = scmp.ne.s32.totalorder %s177, %s178
      %p189 = scmp.eq.s32.totalorder %s21, 0
      %p190 = por %p188, %p189
      %p191 = scmp.ne.s32.totalorder %s177, %s178
      %p192 = scmp.eq.s32.totalorder %s22, 1
      %p193 = por %p191, %p192
      %p195 = scmp.ne.s32.totalorder %s178, %s194
      %p196 = scmp.eq.s32.totalorder %s22, 0
      %p197 = por %p195, %p196
      %p198 = scmp.le.s32.totalorder 1, %s16
      %p199 = scmp.lt.s32.totalorder %s16, 3
      %p200 = pnand %p198, %p199
      %p201 = pneg %p200
      // Predicated region
      $region9: #{tpu_custom_call.1} parent=5 // pred_check
        _
      $region10: #{tpu_custom_call.1} parent=5 // pred_check_branch
        %203 = sbr.rel (%p200) target = $region12
      $region11: #{tpu_custom_call.1} parent=5 // pred_region
        %s204 = ssub.s32 %s16, 1
        // Predicated region
        $region13: #{tpu_custom_call.1} parent=11 // pred_check
          %p205 = pneg %p49
        $region14: #{tpu_custom_call.1} parent=11 // pred_check_branch
          %207 = sbr.rel (%p205) target = $region16
        $region15: #{tpu_custom_call.1} parent=11 // pred_region
          %s209 = ssub.s32 16, 16
          %210 = vsyncadd [#allocation7], %s209
          %213 = dma.hbm_to_smem %s0, 16, [#allocation4], [#allocation7]
        $region16: #{tpu_custom_call.1} parent=11 // pred_fallthru
          _
        // Predicated region
        $region17: #{tpu_custom_call.1} parent=11 // pred_check
          %p214 = pneg %p75
        $region18: #{tpu_custom_call.1} parent=11 // pred_check_branch
          %216 = sbr.rel (%p214) target = $region20
        $region19: #{tpu_custom_call.1} parent=11 // pred_region
          %s218 = ssub.s32 1024, 1024
          %219 = vsyncadd [#allocation5], %s218
          %s220 = smul.addr %s25, 8
          %s221 = smul.addr %s220, 128
          %s222 = scalar_lea.hbm %s1, %s221
          %s224 = sshll.u32 [#allocation8], 4
          %s225 = int_to_ptr.vmem [resolvable:$true] %s224
          %227 = dma.hbm_to_vmem [thread:$0]  %s222, 1024, %s225, [#allocation5]
        $region20: #{tpu_custom_call.1} parent=11 // pred_fallthru
          _
        // Predicated region
        $region21: #{tpu_custom_call.1} parent=11 // pred_check
          %p228 = pneg %p96
        $region22: #{tpu_custom_call.1} parent=11 // pred_check_branch
          %230 = sbr.rel (%p228) target = $region24
        $region23: #{tpu_custom_call.1} parent=11 // pred_region
          %s232 = ssub.s32 128, 128
          %233 = vsyncadd [#allocation10], %s232
          %s235 = sshll.u32 [#allocation9], 4
          %s236 = int_to_ptr.vmem [resolvable:$true] %s235
          %238 = dma.hbm_to_vmem [thread:$0]  %s2, 128, %s236, [#allocation10]
        $region24: #{tpu_custom_call.1} parent=11 // pred_fallthru
          _
        // Predicated region
        $region25: #{tpu_custom_call.1} parent=11 // pred_check
          %p239 = pneg %p117
        $region26: #{tpu_custom_call.1} parent=11 // pred_check_branch
          %241 = sbr.rel (%p239) target = $region28
        $region27: #{tpu_custom_call.1} parent=11 // pred_region
          _
        $region28: #{tpu_custom_call.1} parent=11 // pred_fallthru
          _
        // Predicated region
        $region29: #{tpu_custom_call.1} parent=11 // pred_check
          %p242 = pneg %p164
        $region30: #{tpu_custom_call.1} parent=11 // pred_check_branch
          %244 = sbr.rel (%p242) target = $region32
        $region31: #{tpu_custom_call.1} parent=11 // pred_region
          _
        $region32: #{tpu_custom_call.1} parent=11 // pred_fallthru
          _
      $region12: #{tpu_custom_call.1} parent=5 // pred_fallthru
        _
      %p245 = scmp.lt.s32.totalorder %s16, 2
      // Predicated region
      $region33: #{tpu_custom_call.1} parent=5 // pred_check
        %p246 = pneg %p245
      $region34: #{tpu_custom_call.1} parent=5 // pred_check_branch
        %248 = sbr.rel (%p246) target = $region36
      $region35: #{tpu_custom_call.1} parent=5 // pred_region
        // Predicated region
        $region37: #{tpu_custom_call.1} parent=35 // pred_check
          %p249 = pneg %p137
        $region38: #{tpu_custom_call.1} parent=35 // pred_check_branch
          %251 = sbr.rel (%p249) target = $region40
        $region39: #{tpu_custom_call.1} parent=35 // pred_region
          %s252 = sand.u32 %s16, 1
          %s253 = scalar_lea.sflag [#allocation5], %s252
          %s254 = sand.u32 %s127, 1
          %s255 = smul.addr %s254, 1024
          %s256 = scalar_lea.vmem [#allocation11], %s255
          %s257 = smul.u32 64, %s24
          %s259 = ssub.s32 16384, 16384
          %260 = vsyncadd %s253, %s259
          %s261 = smul.addr %s257, 2
          %s262 = smul.addr %s261, 128
          %s263 = scalar_lea.hbm %s4, %s262
          %s264 = sshll.u32 %s256, 4
          %s265 = int_to_ptr.vmem [resolvable:$true] %s264
          %270 = dma.hbm_to_vmem [thread:$0]  %s263, 16384, %s265, %s253, 256, 256, 16
        $region40: #{tpu_custom_call.1} parent=35 // pred_fallthru
          _
      $region36: #{tpu_custom_call.1} parent=5 // pred_fallthru
        _
      %p271 = scmp.le.s32.totalorder 1, %s16
      %p272 = scmp.lt.s32.totalorder %s16, 3
      %p273 = pnand %p271, %p272
      %p274 = pneg %p273
      // Predicated region
      $region41: #{tpu_custom_call.1} parent=5 // pred_check
        _
      $region42: #{tpu_custom_call.1} parent=5 // pred_check_branch
        %276 = sbr.rel (%p273) target = $region44
      $region43: #{tpu_custom_call.1} parent=5 // pred_region
        %s277 = ssub.s32 %s16, 1
        // Predicated region
        $region45: #{tpu_custom_call.1} parent=43 // pred_check
          %p278 = pneg %p49
        $region46: #{tpu_custom_call.1} parent=43 // pred_check_branch
          %280 = sbr.rel (%p278) target = $region48
        $region47: #{tpu_custom_call.1} parent=43 // pred_region
          %281 = dma.done [#allocation7], 16
        $region48: #{tpu_custom_call.1} parent=43 // pred_fallthru
          _
        // Predicated region
        $region49: #{tpu_custom_call.1} parent=43 // pred_check
          %p282 = pneg %p75
        $region50: #{tpu_custom_call.1} parent=43 // pred_check_branch
          %284 = sbr.rel (%p282) target = $region52
        $region51: #{tpu_custom_call.1} parent=43 // pred_region
          %285 = dma.done [#allocation5], 1024
        $region52: #{tpu_custom_call.1} parent=43 // pred_fallthru
          _
        // Predicated region
        $region53: #{tpu_custom_call.1} parent=43 // pred_check
          %p286 = pneg %p96
        $region54: #{tpu_custom_call.1} parent=43 // pred_check_branch
          %288 = sbr.rel (%p286) target = $region56
        $region55: #{tpu_custom_call.1} parent=43 // pred_region
          %289 = dma.done [#allocation10], 128
        $region56: #{tpu_custom_call.1} parent=43 // pred_fallthru
          _
        %s290 = sand.u32 %s21, 1
        %s291 = scalar_lea.sflag [#allocation5], %s290
        %s292 = sand.u32 %s130, 1
        %s293 = smul.addr %s292, 1024
        %s294 = scalar_lea.vmem [#allocation11], %s293
        // Predicated region
        $region57: #{tpu_custom_call.1} parent=43 // pred_check
          %p295 = pneg %p143
        $region58: #{tpu_custom_call.1} parent=43 // pred_check_branch
          %297 = sbr.rel (%p295) target = $region60
        $region59: #{tpu_custom_call.1} parent=43 // pred_region
          %298 = dma.done %s291, 16384
        $region60: #{tpu_custom_call.1} parent=43 // pred_fallthru
          _
        %299 = sfence
        %p300 = pneg %p49
        %p301 = pneg %p46
        %p302 = pneg %p75
        %p303 = pneg %p72
        %p304 = pneg %p96
        %p305 = pneg %p93
        %p306 = pneg %p117
        %p307 = pneg %p114
        %s308 = sand.u32 %s21, 1
        %s309 = scalar_lea.sflag [#allocation5], %s308
        %s310 = sand.u32 %s130, 1
        %s311 = smul.addr %s310, 1024
        %s312 = scalar_lea.vmem [#allocation11], %s311
        %p313 = pneg %p143
        %p314 = pneg %p140
        %p315 = pneg %p164
        %p316 = pneg %p161
        %p317 = pneg %p190
        %p318 = pneg %p187
        %s319 = smul.u32 64, %s26
        %p320 = scmp.eq.s32.totalorder %s26, 0
        // Predicated region
        $region61: #{tpu_custom_call.1} parent=43 // pred_check
          %p321 = pneg %p320
        $region62: #{tpu_custom_call.1} parent=43 // pred_check_branch
          %323 = sbr.rel (%p321) target = $region64
        $region63: #{tpu_custom_call.1} parent=43 // pred_region
          %v324 = vld [vmem:[#allocation8] sm:$0xff]
          %v325 = vld [vmem:[#allocation8 + $0x8] sm:$0xff]
          %v326 = vld [vmem:[#allocation8 + $0x10] sm:$0xff]
          %v327 = vld [vmem:[#allocation8 + $0x18] sm:$0xff]
          %v328 = vld [vmem:[#allocation8 + $0x20] sm:$0xff]
          %v329 = vld [vmem:[#allocation8 + $0x28] sm:$0xff]
          %v330 = vld [vmem:[#allocation8 + $0x30] sm:$0xff]
          %v331 = vld [vmem:[#allocation8 + $0x38] sm:$0xff]
          %v332 = vadd.f32 %v324, %v325
          %v333 = vadd.f32 %v332, %v326
          %v334 = vadd.f32 %v333, %v327
          %v335 = vadd.f32 %v334, %v328
          %v336 = vadd.f32 %v335, %v329
          %v337 = vadd.f32 %v336, %v330
          %v338 = vadd.f32 %v337, %v331
          %339 = vadd.xlane.f32.xlu0 %v338
          %v340 = vpop.xlane.xlu0 %339
          %v341 = vrcp.pop 1024.0
          %v342 = vmul.f32 %v340, %v341
          %v343 = vsub.f32 %v324, %v342
          %v344 = vsub.f32 %v325, %v342
          %v345 = vsub.f32 %v326, %v342
          %v346 = vsub.f32 %v327, %v342
          %v347 = vsub.f32 %v328, %v342
          %v348 = vsub.f32 %v329, %v342
          %v349 = vsub.f32 %v330, %v342
          %v350 = vsub.f32 %v331, %v342
          %v351 = vmul.f32 %v343, %v343
          %v352 = vmul.f32 %v344, %v344
          %v353 = vmul.f32 %v345, %v345
          %v354 = vmul.f32 %v346, %v346
          %v355 = vmul.f32 %v347, %v347
          %v356 = vmul.f32 %v348, %v348
          %v357 = vmul.f32 %v349, %v349
          %v358 = vmul.f32 %v350, %v350
          %v359 = vadd.f32 %v351, %v352
          %v360 = vadd.f32 %v359, %v353
          %v361 = vadd.f32 %v360, %v354
          %v362 = vadd.f32 %v361, %v355
          %v363 = vadd.f32 %v362, %v356
          %v364 = vadd.f32 %v363, %v357
          %v365 = vadd.f32 %v364, %v358
          %366 = vadd.xlane.f32.xlu0 %v365
          %v367 = vpop.xlane.xlu0 %366
          %v368 = vmul.f32 %v367, %v341
          %v369 = vadd.f32 %v368, 1e-05
          %v370 = vrsqrt.pop %v369
          %v371 = vmul.f32 %v343, %v370
          %v372 = vmul.f32 %v344, %v370
          %v373 = vmul.f32 %v345, %v370
          %v374 = vmul.f32 %v346, %v370
          %v375 = vmul.f32 %v347, %v370
          %v376 = vmul.f32 %v348, %v370
          %v377 = vmul.f32 %v349, %v370
          %v378 = vmul.f32 %v350, %v370
          %v379 = vld [vmem:[#allocation9] sm:$0xff]
          %v381 = vlaneseq
          %v382 = vshrl.u32 %v381, 7
          %v383 = vsub.s32 0, %v382
          %v384 = vrot.slane %v379, %v383
          %v385 = vlaneseq
          %v386 = vshrl.u32 %v385, 7
          %v387 = vsub.s32 1, %v386
          %v388 = vrot.slane %v379, %v387
          %v389 = vlaneseq
          %v390 = vshrl.u32 %v389, 7
          %v391 = vsub.s32 2, %v390
          %v392 = vrot.slane %v379, %v391
          %v393 = vlaneseq
          %v394 = vshrl.u32 %v393, 7
          %v395 = vsub.s32 3, %v394
          %v396 = vrot.slane %v379, %v395
          %v397 = vlaneseq
          %v398 = vshrl.u32 %v397, 7
          %v399 = vsub.s32 4, %v398
          %v400 = vrot.slane %v379, %v399
          %v401 = vlaneseq
          %v402 = vshrl.u32 %v401, 7
          %v403 = vsub.s32 5, %v402
          %v404 = vrot.slane %v379, %v403
          %v405 = vlaneseq
          %v406 = vshrl.u32 %v405, 7
          %v407 = vsub.s32 6, %v406
          %v408 = vrot.slane %v379, %v407
          %v409 = vlaneseq
          %v410 = vshrl.u32 %v409, 7
          %v411 = vsub.s32 7, %v410
          %v412 = vrot.slane %v379, %v411
          %v421 = vmul.f32 %v371, %v384
          %v422 = vmul.f32 %v372, %v388
          %v423 = vmul.f32 %v373, %v392
          %v424 = vmul.f32 %v374, %v396
          %v425 = vmul.f32 %v375, %v400
          %v426 = vmul.f32 %v376, %v404
          %v427 = vmul.f32 %v377, %v408
          %v428 = vmul.f32 %v378, %v412
          %v429 = vld [vmem:[%s3] sm:$0xff]
          %v431 = vlaneseq
          %v432 = vshrl.u32 %v431, 7
          %v433 = vsub.s32 0, %v432
          %v434 = vrot.slane %v429, %v433
          %v435 = vlaneseq
          %v436 = vshrl.u32 %v435, 7
          %v437 = vsub.s32 1, %v436
          %v438 = vrot.slane %v429, %v437
          %v439 = vlaneseq
          %v440 = vshrl.u32 %v439, 7
          %v441 = vsub.s32 2, %v440
          %v442 = vrot.slane %v429, %v441
          %v443 = vlaneseq
          %v444 = vshrl.u32 %v443, 7
          %v445 = vsub.s32 3, %v444
          %v446 = vrot.slane %v429, %v445
          %v447 = vlaneseq
          %v448 = vshrl.u32 %v447, 7
          %v449 = vsub.s32 4, %v448
          %v450 = vrot.slane %v429, %v449
          %v451 = vlaneseq
          %v452 = vshrl.u32 %v451, 7
          %v453 = vsub.s32 5, %v452
          %v454 = vrot.slane %v429, %v453
          %v455 = vlaneseq
          %v456 = vshrl.u32 %v455, 7
          %v457 = vsub.s32 6, %v456
          %v458 = vrot.slane %v429, %v457
          %v459 = vlaneseq
          %v460 = vshrl.u32 %v459, 7
          %v461 = vsub.s32 7, %v460
          %v462 = vrot.slane %v429, %v461
          %v471 = vadd.f32 %v421, %v434
          %v472 = vadd.f32 %v422, %v438
          %v473 = vadd.f32 %v423, %v442
          %v474 = vadd.f32 %v424, %v446
          %v475 = vadd.f32 %v425, %v450
          %v476 = vadd.f32 %v426, %v454
          %v477 = vadd.f32 %v427, %v458
          %v478 = vadd.f32 %v428, %v462
          %479 = vst [vmem:[#allocation2] sm:$0xff] %v471
          %480 = vst [vmem:[#allocation2 + $0x8] sm:$0xff] %v472
          %481 = vst [vmem:[#allocation2 + $0x10] sm:$0xff] %v473
          %482 = vst [vmem:[#allocation2 + $0x18] sm:$0xff] %v474
          %s483 = scalar_lea.vmem [#allocation2], 32
          %484 = vst [vmem:[%s483] sm:$0xff] %v475
          %485 = vst [vmem:[%s483 + $0x8] sm:$0xff] %v476
          %486 = vst [vmem:[%s483 + $0x10] sm:$0xff] %v477
          %487 = vst [vmem:[%s483 + $0x18] sm:$0xff] %v478
          %488 = vst [vmem:[#allocation3] sm:$0xff] 0.0
          %489 = vst [vmem:[#allocation3 + $0x8] sm:$0xff] 0.0
        $region64: #{tpu_custom_call.1} parent=43 // pred_fallthru
          _
        %v490 = vld [vmem:[#allocation3] sm:$0xff]
        %v491 = vld [vmem:[#allocation3 + $0x8] sm:$0xff]
        %s492 = smul.u32 %s26, 4
        %s493 = smul.addr %s492, 8
        %s494 = scalar_lea.vmem [#allocation2], %s493
        %v495 = vld [vmem:[%s494] sm:$0xff]
        %v496 = vld [vmem:[%s494 + $0x8] sm:$0xff]
        %v497 = vld [vmem:[%s494 + $0x10] sm:$0xff]
        %v498 = vld [vmem:[%s494 + $0x18] sm:$0xff]
        %v499 = vld [vmem:[%s294] sm:$0xff]
        %v500 = vld [vmem:[%s294 + $0x8] sm:$0xff]
        %v501 = vld [vmem:[%s294 + $0x10] sm:$0xff]
        %v502 = vld [vmem:[%s294 + $0x18] sm:$0xff]
        %v503 = vld [vmem:[%s294 + $0x20] sm:$0xff]
        %v504 = vld [vmem:[%s294 + $0x28] sm:$0xff]
        %v505 = vld [vmem:[%s294 + $0x30] sm:$0xff]
        %v506 = vld [vmem:[%s294 + $0x38] sm:$0xff]
        %v507 = vld [vmem:[%s294 + $0x40] sm:$0xff]
        %v508 = vld [vmem:[%s294 + $0x48] sm:$0xff]
        %v509 = vld [vmem:[%s294 + $0x50] sm:$0xff]
        %v510 = vld [vmem:[%s294 + $0x58] sm:$0xff]
        %v511 = vld [vmem:[%s294 + $0x60] sm:$0xff]
        %v512 = vld [vmem:[%s294 + $0x68] sm:$0xff]
        %v513 = vld [vmem:[%s294 + $0x70] sm:$0xff]
        %v514 = vld [vmem:[%s294 + $0x78] sm:$0xff]
        %v515 = vld [vmem:[%s294 + $0x80] sm:$0xff]
        %v516 = vld [vmem:[%s294 + $0x88] sm:$0xff]
        %v517 = vld [vmem:[%s294 + $0x90] sm:$0xff]
        %v518 = vld [vmem:[%s294 + $0x98] sm:$0xff]
        %v519 = vld [vmem:[%s294 + $0xa0] sm:$0xff]
        %v520 = vld [vmem:[%s294 + $0xa8] sm:$0xff]
        %v521 = vld [vmem:[%s294 + $0xb0] sm:$0xff]
        %v522 = vld [vmem:[%s294 + $0xb8] sm:$0xff]
        %v523 = vld [vmem:[%s294 + $0xc0] sm:$0xff]
        %v524 = vld [vmem:[%s294 + $0xc8] sm:$0xff]
        %v525 = vld [vmem:[%s294 + $0xd0] sm:$0xff]
        %v526 = vld [vmem:[%s294 + $0xd8] sm:$0xff]
        %v527 = vld [vmem:[%s294 + $0xe0] sm:$0xff]
        %v528 = vld [vmem:[%s294 + $0xe8] sm:$0xff]
        %v529 = vld [vmem:[%s294 + $0xf0] sm:$0xff]
        %v530 = vld [vmem:[%s294 + $0xf8] sm:$0xff]
        %v531 = vld [vmem:[%s294 + $0x100] sm:$0xff]
        %v532 = vld [vmem:[%s294 + $0x108] sm:$0xff]
        %v533 = vld [vmem:[%s294 + $0x110] sm:$0xff]
        %v534 = vld [vmem:[%s294 + $0x118] sm:$0xff]
        %v535 = vld [vmem:[%s294 + $0x120] sm:$0xff]
        %v536 = vld [vmem:[%s294 + $0x128] sm:$0xff]
        %v537 = vld [vmem:[%s294 + $0x130] sm:$0xff]
        %v538 = vld [vmem:[%s294 + $0x138] sm:$0xff]
        %v539 = vld [vmem:[%s294 + $0x140] sm:$0xff]
        %v540 = vld [vmem:[%s294 + $0x148] sm:$0xff]
        %v541 = vld [vmem:[%s294 + $0x150] sm:$0xff]
        %v542 = vld [vmem:[%s294 + $0x158] sm:$0xff]
        %v543 = vld [vmem:[%s294 + $0x160] sm:$0xff]
        %v544 = vld [vmem:[%s294 + $0x168] sm:$0xff]
        %v545 = vld [vmem:[%s294 + $0x170] sm:$0xff]
        %v546 = vld [vmem:[%s294 + $0x178] sm:$0xff]
        %v547 = vld [vmem:[%s294 + $0x180] sm:$0xff]
        %v548 = vld [vmem:[%s294 + $0x188] sm:$0xff]
        %v549 = vld [vmem:[%s294 + $0x190] sm:$0xff]
        %v550 = vld [vmem:[%s294 + $0x198] sm:$0xff]
        %v551 = vld [vmem:[%s294 + $0x1a0] sm:$0xff]
        %v552 = vld [vmem:[%s294 + $0x1a8] sm:$0xff]
        %v553 = vld [vmem:[%s294 + $0x1b0] sm:$0xff]
        %v554 = vld [vmem:[%s294 + $0x1b8] sm:$0xff]
        %v555 = vld [vmem:[%s294 + $0x1c0] sm:$0xff]
        %v556 = vld [vmem:[%s294 + $0x1c8] sm:$0xff]
        %v557 = vld [vmem:[%s294 + $0x1d0] sm:$0xff]
        %v558 = vld [vmem:[%s294 + $0x1d8] sm:$0xff]
        %v559 = vld [vmem:[%s294 + $0x1e0] sm:$0xff]
        %v560 = vld [vmem:[%s294 + $0x1e8] sm:$0xff]
        %v561 = vld [vmem:[%s294 + $0x1f0] sm:$0xff]
        %v562 = vld [vmem:[%s294 + $0x1f8] sm:$0xff]
        %v563 = vld [vmem:[%s294 + $0x200] sm:$0xff]
        %v564 = vld [vmem:[%s294 + $0x208] sm:$0xff]
        %v565 = vld [vmem:[%s294 + $0x210] sm:$0xff]
        %v566 = vld [vmem:[%s294 + $0x218] sm:$0xff]
        %v567 = vld [vmem:[%s294 + $0x220] sm:$0xff]
        %v568 = vld [vmem:[%s294 + $0x228] sm:$0xff]
        %v569 = vld [vmem:[%s294 + $0x230] sm:$0xff]
        %v570 = vld [vmem:[%s294 + $0x238] sm:$0xff]
        %v571 = vld [vmem:[%s294 + $0x240] sm:$0xff]
        %v572 = vld [vmem:[%s294 + $0x248] sm:$0xff]
        %v573 = vld [vmem:[%s294 + $0x250] sm:$0xff]
        %v574 = vld [vmem:[%s294 + $0x258] sm:$0xff]
        %v575 = vld [vmem:[%s294 + $0x260] sm:$0xff]
        %v576 = vld [vmem:[%s294 + $0x268] sm:$0xff]
        %v577 = vld [vmem:[%s294 + $0x270] sm:$0xff]
        %v578 = vld [vmem:[%s294 + $0x278] sm:$0xff]
        %v579 = vld [vmem:[%s294 + $0x280] sm:$0xff]
        %v580 = vld [vmem:[%s294 + $0x288] sm:$0xff]
        %v581 = vld [vmem:[%s294 + $0x290] sm:$0xff]
        %v582 = vld [vmem:[%s294 + $0x298] sm:$0xff]
        %v583 = vld [vmem:[%s294 + $0x2a0] sm:$0xff]
        %v584 = vld [vmem:[%s294 + $0x2a8] sm:$0xff]
        %v585 = vld [vmem:[%s294 + $0x2b0] sm:$0xff]
        %v586 = vld [vmem:[%s294 + $0x2b8] sm:$0xff]
        %v587 = vld [vmem:[%s294 + $0x2c0] sm:$0xff]
        %v588 = vld [vmem:[%s294 + $0x2c8] sm:$0xff]
        %v589 = vld [vmem:[%s294 + $0x2d0] sm:$0xff]
        %v590 = vld [vmem:[%s294 + $0x2d8] sm:$0xff]
        %v591 = vld [vmem:[%s294 + $0x2e0] sm:$0xff]
        %v592 = vld [vmem:[%s294 + $0x2e8] sm:$0xff]
        %v593 = vld [vmem:[%s294 + $0x2f0] sm:$0xff]
        %v594 = vld [vmem:[%s294 + $0x2f8] sm:$0xff]
        %v595 = vld [vmem:[%s294 + $0x300] sm:$0xff]
        %v596 = vld [vmem:[%s294 + $0x308] sm:$0xff]
        %v597 = vld [vmem:[%s294 + $0x310] sm:$0xff]
        %v598 = vld [vmem:[%s294 + $0x318] sm:$0xff]
        %v599 = vld [vmem:[%s294 + $0x320] sm:$0xff]
        %v600 = vld [vmem:[%s294 + $0x328] sm:$0xff]
        %v601 = vld [vmem:[%s294 + $0x330] sm:$0xff]
        %v602 = vld [vmem:[%s294 + $0x338] sm:$0xff]
        %v603 = vld [vmem:[%s294 + $0x340] sm:$0xff]
        %v604 = vld [vmem:[%s294 + $0x348] sm:$0xff]
        %v605 = vld [vmem:[%s294 + $0x350] sm:$0xff]
        %v606 = vld [vmem:[%s294 + $0x358] sm:$0xff]
        %v607 = vld [vmem:[%s294 + $0x360] sm:$0xff]
        %v608 = vld [vmem:[%s294 + $0x368] sm:$0xff]
        %v609 = vld [vmem:[%s294 + $0x370] sm:$0xff]
        %v610 = vld [vmem:[%s294 + $0x378] sm:$0xff]
        %v611 = vld [vmem:[%s294 + $0x380] sm:$0xff]
        %v612 = vld [vmem:[%s294 + $0x388] sm:$0xff]
        %v613 = vld [vmem:[%s294 + $0x390] sm:$0xff]
        %v614 = vld [vmem:[%s294 + $0x398] sm:$0xff]
        %v615 = vld [vmem:[%s294 + $0x3a0] sm:$0xff]
        %v616 = vld [vmem:[%s294 + $0x3a8] sm:$0xff]
        %v617 = vld [vmem:[%s294 + $0x3b0] sm:$0xff]
        %v618 = vld [vmem:[%s294 + $0x3b8] sm:$0xff]
        %v619 = vld [vmem:[%s294 + $0x3c0] sm:$0xff]
        %v620 = vld [vmem:[%s294 + $0x3c8] sm:$0xff]
        %v621 = vld [vmem:[%s294 + $0x3d0] sm:$0xff]
        %v622 = vld [vmem:[%s294 + $0x3d8] sm:$0xff]
        %v623 = vld [vmem:[%s294 + $0x3e0] sm:$0xff]
        %v624 = vld [vmem:[%s294 + $0x3e8] sm:$0xff]
        %v625 = vld [vmem:[%s294 + $0x3f0] sm:$0xff]
        %v626 = vld [vmem:[%s294 + $0x3f8] sm:$0xff]
        %627 = vmatprep.subr.mxu0 %v500
        %628 = vmatpush1.msra.mxu0 %v499
        %629 = vmatprep.subr.mxu0 %v502
        %630 = vmatpush1.msra.mxu0 %v501
        %631 = vmatprep.subr.mxu0 %v504
        %632 = vmatpush1.msra.mxu0 %v503
        %633 = vmatprep.subr.mxu0 %v506
        %634 = vmatpush1.msra.mxu0 %v505
        %635 = vmatprep.subr.mxu0 %v508
        %636 = vmatpush1.msra.mxu0 %v507
        %637 = vmatprep.subr.mxu0 %v510
        %638 = vmatpush1.msra.mxu0 %v509
        %639 = vmatprep.subr.mxu0 %v512
        %640 = vmatpush1.msra.mxu0 %v511
        %641 = vmatprep.subr.mxu0 %v514
        %642 = vmatpush1.msra.mxu0 %v513
        %643 = vmatprep.subr.mxu0 %v516
        %644 = vmatpush1.msra.mxu0 %v515
        %645 = vmatprep.subr.mxu0 %v518
        %646 = vmatpush1.msra.mxu0 %v517
        %647 = vmatprep.subr.mxu0 %v520
        %648 = vmatpush1.msra.mxu0 %v519
        %649 = vmatprep.subr.mxu0 %v522
        %650 = vmatpush1.msra.mxu0 %v521
        %651 = vmatprep.subr.mxu0 %v524
        %652 = vmatpush1.msra.mxu0 %v523
        %653 = vmatprep.subr.mxu0 %v526
        %654 = vmatpush1.msra.mxu0 %v525
        %655 = vmatprep.subr.mxu0 %v528
        %656 = vmatpush1.msra.mxu0 %v527
        %657 = vmatprep.subr.mxu0 %v530
        %658 = vmatpush1.msra.mxu0 %v529
        %659 = vmatprep.subr.mxu0 %v532
        %660 = vmatpush1.msra.mxu0 %v531
        %661 = vmatprep.subr.mxu0 %v534
        %662 = vmatpush1.msra.mxu0 %v533
        %663 = vmatprep.subr.mxu0 %v536
        %664 = vmatpush1.msra.mxu0 %v535
        %665 = vmatprep.subr.mxu0 %v538
        %666 = vmatpush1.msra.mxu0 %v537
        %667 = vmatprep.subr.mxu0 %v540
        %668 = vmatpush1.msra.mxu0 %v539
        %669 = vmatprep.subr.mxu0 %v542
        %670 = vmatpush1.msra.mxu0 %v541
        %671 = vmatprep.subr.mxu0 %v544
        %672 = vmatpush1.msra.mxu0 %v543
        %673 = vmatprep.subr.mxu0 %v546
        %674 = vmatpush1.msra.mxu0 %v545
        %675 = vmatprep.subr.mxu0 %v548
        %676 = vmatpush1.msra.mxu0 %v547
        %677 = vmatprep.subr.mxu0 %v550
        %678 = vmatpush1.msra.mxu0 %v549
        %679 = vmatprep.subr.mxu0 %v552
        %680 = vmatpush1.msra.mxu0 %v551
        %681 = vmatprep.subr.mxu0 %v554
        %682 = vmatpush1.msra.mxu0 %v553
        %683 = vmatprep.subr.mxu0 %v556
        %684 = vmatpush1.msra.mxu0 %v555
        %685 = vmatprep.subr.mxu0 %v558
        %686 = vmatpush1.msra.mxu0 %v557
        %687 = vmatprep.subr.mxu0 %v560
        %688 = vmatpush1.msra.mxu0 %v559
        %689 = vmatprep.subr.mxu0 %v562
        %690 = vmatpush1.msra.mxu0 %v561
        %691 = vmatprep.mubr.f32.mxu0 %v496
        %692 = vmatmul.mubr.f32.gmra.mrb[0].mxu0 %v495
        %v693 = vpop.f32.mrb[0].mxu0
        %v694 = vadd.f32 0.0, %v693
        %v695 = vpop.f32.mrb[0].mxu0
        %v696 = vadd.f32 0.0, %v695
        %697 = vdwg.mxu0
        %698 = vmatprep.subr.mxu0 %v564
        %699 = vmatpush1.msra.mxu0 %v563
        %700 = vmatprep.subr.mxu0 %v566
        %701 = vmatpush1.msra.mxu0 %v565
        %702 = vmatprep.subr.mxu0 %v568
        %703 = vmatpush1.msra.mxu0 %v567
        %704 = vmatprep.subr.mxu0 %v570
        %705 = vmatpush1.msra.mxu0 %v569
        %706 = vmatprep.subr.mxu0 %v572
        %707 = vmatpush1.msra.mxu0 %v571
        %708 = vmatprep.subr.mxu0 %v574
        %709 = vmatpush1.msra.mxu0 %v573
        %710 = vmatprep.subr.mxu0 %v576
        %711 = vmatpush1.msra.mxu0 %v575
        %712 = vmatprep.subr.mxu0 %v578
        %713 = vmatpush1.msra.mxu0 %v577
        %714 = vmatprep.subr.mxu0 %v580
        %715 = vmatpush1.msra.mxu0 %v579
        %716 = vmatprep.subr.mxu0 %v582
        %717 = vmatpush1.msra.mxu0 %v581
        %718 = vmatprep.subr.mxu0 %v584
        %719 = vmatpush1.msra.mxu0 %v583
        %720 = vmatprep.subr.mxu0 %v586
        %721 = vmatpush1.msra.mxu0 %v585
        %722 = vmatprep.subr.mxu0 %v588
        %723 = vmatpush1.msra.mxu0 %v587
        %724 = vmatprep.subr.mxu0 %v590
        %725 = vmatpush1.msra.mxu0 %v589
        %726 = vmatprep.subr.mxu0 %v592
        %727 = vmatpush1.msra.mxu0 %v591
        %728 = vmatprep.subr.mxu0 %v594
        %729 = vmatpush1.msra.mxu0 %v593
        %730 = vmatprep.subr.mxu0 %v596
        %731 = vmatpush1.msra.mxu0 %v595
        %732 = vmatprep.subr.mxu0 %v598
        %733 = vmatpush1.msra.mxu0 %v597
        %734 = vmatprep.subr.mxu0 %v600
        %735 = vmatpush1.msra.mxu0 %v599
        %736 = vmatprep.subr.mxu0 %v602
        %737 = vmatpush1.msra.mxu0 %v601
        %738 = vmatprep.subr.mxu0 %v604
        %739 = vmatpush1.msra.mxu0 %v603
        %740 = vmatprep.subr.mxu0 %v606
        %741 = vmatpush1.msra.mxu0 %v605
        %742 = vmatprep.subr.mxu0 %v608
        %743 = vmatpush1.msra.mxu0 %v607
        %744 = vmatprep.subr.mxu0 %v610
        %745 = vmatpush1.msra.mxu0 %v609
        %746 = vmatprep.subr.mxu0 %v612
        %747 = vmatpush1.msra.mxu0 %v611
        %748 = vmatprep.subr.mxu0 %v614
        %749 = vmatpush1.msra.mxu0 %v613
        %750 = vmatprep.subr.mxu0 %v616
        %751 = vmatpush1.msra.mxu0 %v615
        %752 = vmatprep.subr.mxu0 %v618
        %753 = vmatpush1.msra.mxu0 %v617
        %754 = vmatprep.subr.mxu0 %v620
        %755 = vmatpush1.msra.mxu0 %v619
        %756 = vmatprep.subr.mxu0 %v622
        %757 = vmatpush1.msra.mxu0 %v621
        %758 = vmatprep.subr.mxu0 %v624
        %759 = vmatpush1.msra.mxu0 %v623
        %760 = vmatprep.subr.mxu0 %v626
        %761 = vmatpush1.msra.mxu0 %v625
        %762 = vmatprep.mubr.f32.mxu0 %v498
        %763 = vmatmul.mubr.f32.gmra.mrb[0].mxu0 %v497
        %v764 = vpop.f32.mrb[0].mxu0
        %v765 = vadd.f32 %v694, %v764
        %v766 = vpop.f32.mrb[0].mxu0
        %v767 = vadd.f32 %v696, %v766
        %768 = vdwg.mxu0
        %v769 = vadd.f32 %v490, %v765
        %v770 = vadd.f32 %v491, %v767
        %771 = vst [vmem:[#allocation3] sm:$0xff] %v769
        %772 = vst [vmem:[#allocation3 + $0x8] sm:$0xff] %v770
        %p773 = scmp.eq.s32.totalorder %s26, 1
        // Predicated region
        $region65: #{tpu_custom_call.1} parent=43 // pred_check
          %p774 = pneg %p773
        $region66: #{tpu_custom_call.1} parent=43 // pred_check_branch
          %776 = sbr.rel (%p774) target = $region68
        $region67: #{tpu_custom_call.1} parent=43 // pred_region
          %v777 = vld [vmem:[#allocation3] sm:$0xff]
          %v778 = vld [vmem:[#allocation3 + $0x8] sm:$0xff]
          %v779 = vld [vmem:[%s5] sm:$0x3]
          %v781 = vlaneseq
          %v782 = vshrl.u32 %v781, 7
          %v783 = vsub.s32 0, %v782
          %v784 = vrot.slane %v779, %v783
          %v785 = vlaneseq
          %v786 = vshrl.u32 %v785, 7
          %v787 = vsub.s32 1, %v786
          %v788 = vrot.slane %v779, %v787
          %v791 = vadd.f32 %v777, %v784
          %v792 = vadd.f32 %v778, %v788
          %v793 = vmax.f32 %v791, 0.0
          %v794 = vmax.f32 %v792, 0.0
          %v795 = vlaneseq
          %v796 = vand.u32 %v795, 127
          %v797 = vadd.s32 %v796, 128
          %vm798 = vcmp.ge.s32.totalorder %v796, 1
          %vm799 = vcmp.ge.s32.totalorder %v797, 1
          %800 = vrot.lane.b32.xlu0 %v793, 1
          %v801 = vpop.permute.xlu0 %800
          %802 = vrot.lane.b32.xlu0 %v794, 1
          %v803 = vpop.permute.xlu0 %802
          %vm804 = vcmp.lt.s32.totalorder %v796, 1
          %v805 = vsel %vm804, %v801, %v803
          %v806 = vsel %vm804, %v803, %v801
          %v807 = vsel %vm798, %v806, 0.0
          %v808 = vsel %vm799, %v805, 0.0
          %vm809 = vcmp.lt.s32.totalorder %v796, 255
          %vm810 = vcmp.lt.s32.totalorder %v797, 255
          %811 = vrot.lane.b32.xlu0 %v793, 127
          %v812 = vpop.permute.xlu0 %811
          %813 = vrot.lane.b32.xlu0 %v794, 127
          %v814 = vpop.permute.xlu0 %813
          %vm815 = vcmp.lt.s32.totalorder %v796, 127
          %v816 = vsel %vm815, %v812, %v814
          %v817 = vsel %vm815, %v814, %v812
          %v818 = vsel %vm809, %v816, 0.0
          %v819 = vsel %vm810, %v817, 0.0
          %s820 = sld [smem:[#allocation4]]
          %v821 = vstv %s820
          %v822 = vmul.f32 %v821, %v807
          %v823 = vmul.f32 %v821, %v808
          %s824 = sld [smem:[#allocation4 + $0x1]]
          %v825 = vstv %s824
          %v826 = vmul.f32 %v825, %v793
          %v827 = vmul.f32 %v825, %v794
          %v828 = vadd.f32 %v822, %v826
          %v829 = vadd.f32 %v823, %v827
          %s830 = sld [smem:[#allocation4 + $0x2]]
          %v831 = vstv %s830
          %v832 = vmul.f32 %v831, %v818
          %v833 = vmul.f32 %v831, %v819
          %v834 = vadd.f32 %v828, %v832
          %v835 = vadd.f32 %v829, %v833
          %v836 = vxor.u32 %v834, 2147483648
          %v837 = vxor.u32 %v835, 2147483648
          %v838 = vmul.f32 %v836, 1.442695
          %v839 = vpow.pop %v838
          %v840 = vmul.f32 %v837, 1.442695
          %v841 = vpow.pop %v840
          %v842 = vadd.f32 %v839, 1.0
          %v843 = vadd.f32 %v841, 1.0
          %v844 = vrcp.pop %v842
          %v845 = vmul.f32 1.0, %v844
          %v846 = vrcp.pop %v843
          %v847 = vmul.f32 1.0, %v846
          %v848 = vmul.f32 %v791, %v845
          %v849 = vmul.f32 %v792, %v847
          %850 = vst [vmem:[#allocation12] sm:$0xff] %v848
          %851 = vst [vmem:[#allocation12 + $0x8] sm:$0xff] %v849
        $region68: #{tpu_custom_call.1} parent=43 // pred_fallthru
          _
        // Predicated region
        $region69: #{tpu_custom_call.1} parent=43 // pred_check
          %p852 = pneg %p187
        $region70: #{tpu_custom_call.1} parent=43 // pred_check_branch
          %854 = sbr.rel (%p852) target = $region72
        $region71: #{tpu_custom_call.1} parent=43 // pred_region
          %s856 = ssub.s32 256, 256
          %857 = vsyncadd [#allocation6], %s856
          %s858 = smul.addr %s25, 2
          %s859 = smul.addr %s858, 128
          %s860 = scalar_lea.hbm %s6, %s859
          %s862 = sshll.u32 [#allocation12], 4
          %s863 = int_to_ptr.vmem [resolvable:$true] %s862
          %865 = dma.vmem_to_hbm [thread:$0]  %s863, 256, %s860, [#allocation6]
        $region72: #{tpu_custom_call.1} parent=43 // pred_fallthru
          _
        // Predicated region
        $region73: #{tpu_custom_call.1} parent=43 // pred_check
          %p866 = pneg %p187
        $region74: #{tpu_custom_call.1} parent=43 // pred_check_branch
          %868 = sbr.rel (%p866) target = $region76
        $region75: #{tpu_custom_call.1} parent=43 // pred_region
          %869 = dma.done [#allocation6], 256
        $region76: #{tpu_custom_call.1} parent=43 // pred_fallthru
          _
      $region44: #{tpu_custom_call.1} parent=5 // pred_fallthru
        _
      %p870 = scmp.le.s32.totalorder 2, %s16
      // Predicated region
      $region77: #{tpu_custom_call.1} parent=5 // pred_check
        %p871 = pneg %p870
      $region78: #{tpu_custom_call.1} parent=5 // pred_check_branch
        %873 = sbr.rel (%p871) target = $region80
      $region79: #{tpu_custom_call.1} parent=5 // pred_region
        %s874 = ssub.s32 %s16, 2
      $region80: #{tpu_custom_call.1} parent=5 // pred_fallthru
        _
    $region6: #{tpu_custom_call.1} parent=1 // loop_footer
      %s20 = sadd.s32 1, %s16
    $region7: #{tpu_custom_call.1} parent=1 // loop_footer_branch
      %15 = sbr.rel target = $region3
    $region8: #{tpu_custom_call.1} parent=1 // loop_exit
      _
    %875 = vsyncpa [#allocation5], 1
    %s876 = scalar_lea.sflag [#allocation5], 1
    %877 = vsyncpa %s876, 1
    %878 = vsyncpa [#allocation10], 1
    %879 = vsyncpa [#allocation6], 1
    %s880 = scalar_lea.sflag [#allocation6], 1
    %881 = vsyncpa %s880, 1
    %882 = vsyncpa [#allocation7], 1
    %s883 = scalar_lea.sflag [#allocation7], 1
    %884 = vsyncpa %s883, 1

</llo_original>
